<compile_context>
chip_gen: v7x
topology: tpu7x:2x2x1
jax: 0.10.0
libtpu: 0.0.40
codegen_flags: <defaults>
</compile_context>

<pallas_src>
import math
import functools

import jax
import jax.numpy as jnp
from jax.experimental import pallas as pl
from jax.experimental.pallas import tpu as pltpu


# Tile targets: tq multiple of 8 (sublane), tk multiple of 128 (lane-dense
# stores).  Actual tiles are derived from the VMEM budget below.
_TQ_TARGET = 512
_TK_TARGET = 1024
_VMEM_BUDGET_BYTES = 24 * 1024 * 1024   # double-buffered data blocks
_VMEM_LIMIT_BYTES = 48 * 1024 * 1024    # scoped-VMEM limit handed to Mosaic
                                        # (fits v5e/v6e 128 MiB and v7x 64 MiB)


def relative_position_bucket(relative_position, num_buckets=32, max_distance=128):
    """JAX port of the PyTorch helper (setup-time glue, runs once)."""
    sign = jnp.sign(relative_position)
    num_buckets //= 2
    n = jnp.abs(relative_position)
    max_exact = num_buckets // 2
    is_small = n < max_exact
    max_bucket_val = num_buckets - 1 - max_exact
    # clamp to avoid log(0); that branch is discarded by the where() anyway
    safe_n = jnp.maximum(n, 1).astype(jnp.float32)
    val_if_large = max_exact + jnp.ceil(
        jnp.log(safe_n / max_exact)
        / math.log((max_distance - 1) / max_exact)
        * max_bucket_val
    ).astype(jnp.int32)
    val_if_large = jnp.minimum(val_if_large, num_buckets - 1)
    ret = jnp.where(is_small, n, val_if_large) * sign
    return ret


def _stream_add_kernel(bias_ref, *rest, has_mask, mask_rank):
    """One grid step = one (H, tq, tk) output slab: out = bias (+ mask)."""
    if has_mask:
        mask_ref, out_ref = rest
    else:
        (out_ref,) = rest
    acc = bias_ref[...]                                   # (H, tq, tk) f32
    if has_mask:
        m = mask_ref[...].astype(jnp.float32)             # native dtype -> f32
        if mask_rank == 2:
            m = m[None, :, :]                             # broadcast over heads
        acc = acc + m
    out_ref[...] = acc.astype(out_ref.dtype)


def _choose_tiles(Q, K, per_qk_elem_bytes):
    """Pick (tq, tk) so double-buffered blocks stay under the VMEM budget."""
    tk = K if K <= _TK_TARGET else _TK_TARGET             # full K or mult of 128
    denom = max(1, tk * per_qk_elem_bytes)
    max_tq = _VMEM_BUDGET_BYTES // denom
    max_tq = max(8, min(int(max_tq), _TQ_TARGET))
    if Q <= max_tq:
        tq = Q                                            # full extent is legal
    else:
        tq = (max_tq // 8) * 8                            # sublane-aligned
    return tq, tk


def _build_mask_spec(mask, BH, H, Q, K, tq, tk):
    """BlockSpec for the mask in its native dtype; broadcast via index_map."""
    if mask.ndim == 2:
        mq, mk = mask.shape
        if mq not in (1, Q) or mk not in (1, K):
            raise ValueError(
                f"2-D attn_mask shape {mask.shape} not broadcastable to ({Q}, {K})")
        full_q, full_k = (mq == Q), (mk == K)
        bq = tq if full_q else 1
        bk = tk if full_k else 1

        def idx2(qi, ki, b):
            return (qi if full_q else 0, ki if full_k else 0)

        return mask, pl.BlockSpec((bq, bk), idx2), 2

    if mask.ndim == 3:
        m0, m1, m2 = mask.shape
        if m0 != BH or m1 not in (1, Q) or m2 not in (1, K):
            raise ValueError(
                f"3-D attn_mask shape {mask.shape} not broadcastable to "
                f"({BH}, {Q}, {K})")
        full_q, full_k = (m1 == Q), (m2 == K)
        bq = tq if full_q else 1
        bk = tk if full_k else 1

        def idx3(qi, ki, b):
            return (b, qi if full_q else 0, ki if full_k else 0)

        return mask, pl.BlockSpec((H, bq, bk), idx3), 3

    raise ValueError(f"attn_mask rank {mask.ndim} unsupported")


class RelativePositionalEmbedding:
    def __init__(self, bins, max_dist, attention_heads, max_positions, key):
        self.bins = bins
        self.max_dist = max_dist
        self.attention_heads = attention_heads
        self.max_positions = max_positions
        # nn.Embedding(bins, attention_heads).weight — deterministic init
        self.weight = jax.random.normal(
            key, (bins, attention_heads), dtype=jnp.float32)
        pos = jnp.arange(max_positions, dtype=jnp.int32)
        relative_position = pos[None, :] - pos[:, None]
        rp_bucket = relative_position_bucket(
            relative_position, num_buckets=self.bins, max_distance=self.max_dist)
        rp_bucket = rp_bucket - rp_bucket.min()
        self.rp_bucket = rp_bucket.astype(jnp.int32)

    def __call__(self, query_len, key_len, batch_size, attn_mask=None,
                 incremental_inference=False, out_dtype=jnp.float32):
        # incremental_inference == keep only the last query row; equivalent to
        # slicing the bucket table before the gather (the mask is added to the
        # already-sliced values, as in the PyTorch module).
        if incremental_inference:
            rp = self.rp_bucket[query_len - 1:query_len, :key_len]
        else:
            rp = self.rp_bucket[:query_len, :key_len]
        Q, K = int(rp.shape[0]), int(rp.shape[1])
        H = self.attention_heads
        B = int(batch_size)
        BH = B * H
        out_dtype = jnp.dtype(out_dtype)

        # ---- embedding lookup (H*Q*K, tiny vs the B*H*Q*K output) -----------
        bias = jnp.take(self.weight.T, rp, axis=1)        # (H, Q, K) float32

        # ---- mask handling: keep native dtype, never materialise per (B*H) --
        has_mask = attn_mask is not None
        mask = None
        if has_mask:
            mask = jnp.asarray(attn_mask)                  # no host upcast
            if mask.ndim == 3 and mask.shape[0] == 1:
                mask = mask[0]

        # ---- tile selection against the VMEM budget -------------------------
        out_isz = out_dtype.itemsize
        per_elem = 2 * (H * out_isz + H * 4)               # out + bias (f32), x2 buf
        if has_mask:
            per_h = H if mask.ndim == 3 else 1
            per_elem += 2 * per_h * mask.dtype.itemsize
        tq, tk = _choose_tiles(Q, K, per_elem)
        n_q = pl.cdiv(Q, tq)
        n_k = pl.cdiv(K, tk)
        grid = (n_q, n_k, B)

        # ---- BlockSpecs: H folded into the block, bias index ignores b ------
        bias_spec = pl.BlockSpec((H, tq, tk), lambda qi, ki, b: (0, qi, ki))
        out_spec = pl.BlockSpec((H, tq, tk), lambda qi, ki, b: (b, qi, ki))

        in_specs = [bias_spec]
        inputs = [bias]
        mask_rank = 0
        mask_bytes = 0
        if has_mask:
            mask, mask_spec, mask_rank = _build_mask_spec(mask, BH, H, Q, K, tq, tk)
            in_specs.append(mask_spec)
            inputs.append(mask)
            mask_bytes = int(mask.size) * mask.dtype.itemsize

        cost = pl.CostEstimate(
            flops=BH * Q * K,
            transcendentals=0,
            bytes_accessed=BH * Q * K * out_isz + H * Q * K * 4 + mask_bytes,
        )

        kernel = functools.partial(
            _stream_add_kernel, has_mask=has_mask, mask_rank=mask_rank)

        out = pl.pallas_call(
            kernel,
            out_shape=jax.ShapeDtypeStruct((BH, Q, K), out_dtype),
            grid=grid,
            in_specs=in_specs,
            out_specs=out_spec,
            compiler_params=pltpu.CompilerParams(
                dimension_semantics=("parallel", "parallel", "parallel"),
                vmem_limit_bytes=_VMEM_LIMIT_BYTES,
            ),
            cost_estimate=cost,
        )(*inputs)
        return out


def _reference(module, query_len, key_len, batch_size, attn_mask=None,
               incremental_inference=False):
    """Plain-JAX reproduction of the PyTorch forward, for verification."""
    rp = module.rp_bucket[:query_len, :key_len]
    values = module.weight[rp]                       # (Q, K, H)
    values = jnp.transpose(values, (2, 0, 1))        # (H, Q, K)
    values = jnp.tile(values, (batch_size, 1, 1))    # (B*H, Q, K)
    if incremental_inference:
        values = values[:, -1:, :]
    if attn_mask is not None:
        values = values + jnp.asarray(attn_mask, dtype=jnp.float32)
    return values


if __name__ == "__main__":
    key = jax.random.PRNGKey(0)
    k_w, k_m3d, k_m2d, k_m1k, k_wbig, k_mbig = jax.random.split(key, 6)

    bins = 32
    max_dist = 128
    attention_heads = 4
    max_positions = 16
    query_len, key_len, batch_size = 8, 8, 2
    BH = batch_size * attention_heads

    module = RelativePositionalEmbedding(
        bins, max_dist, attention_heads, max_positions, k_w)

    # 1) no-mask path
    out = jax.block_until_ready(module(query_len, key_len, batch_size))
    ref = _reference(module, query_len, key_len, batch_size)
    assert out.shape == (BH, query_len, key_len) and out.dtype == jnp.float32
    assert jnp.allclose(out, ref, atol=1e-5, rtol=1e-5)

    # 2) per-(batch*head) 3-D f32 mask
    m3 = jax.random.normal(k_m3d, (BH, query_len, key_len), dtype=jnp.float32)
    out2 = jax.block_until_ready(module(query_len, key_len, batch_size, attn_mask=m3))
    ref2 = _reference(module, query_len, key_len, batch_size, attn_mask=m3)
    assert jnp.allclose(out2, ref2, atol=1e-5, rtol=1e-5)

    # 3) shared 2-D f32 mask (broadcast over B*H via index_map only)
    m2 = jax.random.normal(k_m2d, (query_len, key_len), dtype=jnp.float32)
    out3 = jax.block_until_ready(module(query_len, key_len, batch_size, attn_mask=m2))
    ref3 = _reference(module, query_len, key_len, batch_size, attn_mask=m2)
    assert jnp.allclose(out3, ref3, atol=1e-5, rtol=1e-5)

    # 4) (1, K) mask — broadcast entirely inside the kernel, never materialised
    m1k = jax.random.normal(k_m1k, (1, key_len), dtype=jnp.float32)
    out4 = jax.block_until_ready(module(query_len, key_len, batch_size, attn_mask=m1k))
    ref4 = _reference(module, query_len, key_len, batch_size, attn_mask=m1k)
    assert jnp.allclose(out4, ref4, atol=1e-5, rtol=1e-5)

    # 5) incremental inference (single query row)
    out5 = jax.block_until_ready(
        module(query_len, key_len, batch_size, incremental_inference=True))
    ref5 = _reference(module, query_len, key_len, batch_size,
                      incremental_inference=True)
    assert out5.shape == (BH, 1, key_len)
    assert jnp.allclose(out5, ref5, atol=1e-5, rtol=1e-5)

    # 6) larger shape: exercises q-tiling (partial boundary block) and a
    #    native bf16 mask read
    big = RelativePositionalEmbedding(bins, max_dist, attention_heads, 640, k_wbig)
    Qb = Kb = 640
    mb = jax.random.normal(k_mbig, (BH, Qb, Kb), dtype=jnp.bfloat16)
    out6 = jax.block_until_ready(big(Qb, Kb, batch_size, attn_mask=mb))
    ref6 = _reference(big, Qb, Kb, batch_size, attn_mask=mb)
    assert jnp.allclose(out6, ref6, atol=1e-5, rtol=1e-5)

    # 7) bf16 output option (halves the dominant HBM write stream)
    out7 = jax.block_until_ready(
        big(Qb, Kb, batch_size, attn_mask=mb, out_dtype=jnp.bfloat16))
    assert out7.dtype == jnp.bfloat16
    assert jnp.allclose(out7.astype(jnp.float32), ref6, atol=5e-2, rtol=5e-2)

    print("KERNEL_OK")
</pallas_src>

<mosaic_0001>
module attributes {stable_mosaic.version = 11 : i64} {
  func.func @_stream_add_kernel(%arg0: i32, %arg1: i32, %arg2: i32, %arg3: memref<4x8x8xf32, #tpu.memory_space<vmem>>, %arg4: memref<4x8x8xf32, #tpu.memory_space<vmem>>) attributes {dimension_semantics = [#tpu.dimension_semantics<parallel>, #tpu.dimension_semantics<parallel>, #tpu.dimension_semantics<parallel>], iteration_bounds = array<i64: 1, 1, 2>, scalar_prefetch = 0 : i64, scratch_operands = 0 : i64, tpu.core_type = #tpu.core_type<tc>, window_params = [{transform_indices = @transform_0, window_bounds = array<i64: 4, 8, 8>}, {transform_indices = @transform_1, window_bounds = array<i64: 4, 8, 8>}]} {
    %c0 = arith.constant 0 : index
    %c0_0 = arith.constant 0 : index
    %c0_1 = arith.constant 0 : index
    %0 = vector.load %arg3[%c0, %c0_0, %c0_1] : memref<4x8x8xf32, #tpu.memory_space<vmem>>, vector<4x8x8xf32>
    %c0_2 = arith.constant 0 : index
    %c0_3 = arith.constant 0 : index
    %c0_4 = arith.constant 0 : index
    %1 = vector.load %arg4[%c0_2, %c0_3, %c0_4] : memref<4x8x8xf32, #tpu.memory_space<vmem>>, vector<4x8x8xf32>
    tpu.vector_store %arg4[%c0_2, %c0_3, %c0_4], %0 {strides = array<i32>} : memref<4x8x8xf32, #tpu.memory_space<vmem>>, vector<4x8x8xf32>,
    return
  }
  func.func @transform_0(%arg0: i32, %arg1: i32, %arg2: i32) -> (i32, i32, i32) {
    %c0_i32 = arith.constant 0 : i32
    %c0_i32_0 = arith.constant 0 : i32
    return %c0_i32, %arg0, %arg1 : i32, i32, i32
  }
  func.func @transform_1(%arg0: i32, %arg1: i32, %arg2: i32) -> (i32, i32, i32) {
    %c0_i32 = arith.constant 0 : i32
    return %arg2, %arg0, %arg1 : i32, i32, i32
  }
}

</mosaic_0001>

<llo_original>
// kernel: tpu_custom_call.1
$region0: #{tpu_custom_call.1}
  #allocation0 [shape = 'u32[]', space=smem, size = 0x4, offset = 0x4, fixed_abs, tag = 'smem constant byte address 0x4 - core index']
  #allocation1 [shape = 'u32[144,128]{1,0:T(1,128)}', space=vmem, size = 0x12000, scoped, tag = 'internal scratch']
  %s0 = inlined_call_operand.hbm [shape: f32[4,8,8], index: 0, kind: input, shape index: {}]
  %s1 = inlined_call_operand.hbm [shape: f32[8,8,8], index: 1, kind: output, shape index: {}]
  %s2 = sld [smem:[#allocation0]]
  $region41: #{tpu_custom_call.1} parent=0
    _
  %s4 = ssub.s32 1, %s2
  %s5 = scalar_select 0, %s4, %s2
  $region1: #{tpu_custom_call.1} parent=0
    #allocation2 [shape = 'u8[16384]{0}', space=vmem, size = 0x4000, scoped, tag = 'input window, operand 0, single buffered']
    #allocation3 [shape = 's32[2]{0}', space=sflag, size = 0x8, scoped, tag = 'scoped memory for tpu_custom_call.1']
    #allocation4 [shape = 's32[2]{0}', space=sflag, size = 0x8, scoped, tag = 'scoped memory for tpu_custom_call.1']
    #allocation5 [shape = 'u8[32768]{0}', space=vmem, size = 0x8000, scoped, tag = 'output window, operand 0']
    %6 = vsyncpa [#allocation3], 0
    %7 = vsyncpa [#allocation4], 0
    %s8 = scalar_lea.sflag [#allocation4], 1
    %9 = vsyncpa %s8, 0
    loop: start=0, step=1, limit=4
    $region2: #{tpu_custom_call.1} parent=1 // loop_pre_header
      _
    $region3: #{tpu_custom_call.1} parent=1 // loop_header
      %s11 = sphi 0, %s15
      %p12 = scmp.ge.s32.totalorder %s11, 4
      %s18 = sphi 0, %s37
      %s19 = sphi 0, %s33
      %s20 = sphi 0, %s29
      %s21 = sphi 0, %s18
      %s22 = sphi 0, %s19
      %s23 = sphi 0, %s20
      %s24 = sphi 0, %s21
      %s25 = sphi 0, %s22
      %s26 = sphi 0, %s23
      %s42 = sphi 0, %s44
      %s45 = sphi 0, %s42
      %s46 = sphi 0, %s45
      %s62 = sphi 0, %s46
      %s72 = sphi 0, %s74
      %s75 = sphi 0, %s72
      %s76 = sphi 0, %s75
      %s92 = sphi 0, %s76
    $region4: #{tpu_custom_call.1} parent=1 // loop_header_branch
      %14 = sbr.rel (%p12) target = $region8
    $region5: #{tpu_custom_call.1} parent=1 // loop_body
      %s16 = ssub.s32 %s11, 1
      %s17 = ssub.s32 %s11, 2
      %s27 = sadd.s32 1, %s20
      %p28 = scmp.ge.s32.totalorder %s27, 2
      %s29 = scalar_select %p28, 0, %s27
      %s30 = sadd.s32 1, %s19
      %s31 = scalar_select %p28, %s30, %s19
      %p32 = scmp.ge.s32.totalorder %s31, 1
      %s33 = scalar_select %p32, 0, %s31
      %s34 = sadd.s32 1, %s18
      %s35 = scalar_select %p32, %s34, %s18
      %p36 = scmp.ge.s32.totalorder %s35, 1
      %s37 = scalar_select %p36, 0, %s35
      %s38 = ssub.s32 %s18, %s37
      %s39 = ssub.s32 %s19, %s33
      %s40 = sor.u32 %s38, %s39
      %p41 = scmp.eq.s32.totalorder %s40, 0
      %s43 = sadd.s32 %s42, 1
      %s44 = scalar_select %p41, %s42, %s43
      %p47 = pneg %p41
      %p48 = scmp.eq.s32.totalorder %s11, 1
      %p49 = por %p47, %p48
      %p50 = scmp.ne.s32.totalorder %s42, %s45
      %p51 = scmp.eq.s32.totalorder %s11, 0
      %p52 = por %p50, %p51
      %p53 = scmp.ne.s32.totalorder %s42, %s45
      %p54 = scmp.eq.s32.totalorder %s16, 1
      %p55 = por %p53, %p54
      %p56 = scmp.ne.s32.totalorder %s45, %s46
      %p57 = scmp.eq.s32.totalorder %s16, 0
      %p58 = por %p56, %p57
      %p59 = scmp.ne.s32.totalorder %s45, %s46
      %p60 = scmp.eq.s32.totalorder %s17, 1
      %p61 = por %p59, %p60
      %p63 = scmp.ne.s32.totalorder %s46, %s62
      %p64 = scmp.eq.s32.totalorder %s17, 0
      %p65 = por %p63, %p64
      %s66 = ssub.s32 %s20, %s29
      %s67 = ssub.s32 %s18, %s37
      %s68 = sor.u32 %s66, %s67
      %s69 = ssub.s32 %s19, %s33
      %s70 = sor.u32 %s68, %s69
      %p71 = scmp.eq.s32.totalorder %s70, 0
      %s73 = sadd.s32 %s72, 1
      %s74 = scalar_select %p71, %s72, %s73
      %p77 = pneg %p71
      %p78 = scmp.eq.s32.totalorder %s11, 1
      %p79 = por %p77, %p78
      %p80 = scmp.ne.s32.totalorder %s72, %s75
      %p81 = scmp.eq.s32.totalorder %s11, 0
      %p82 = por %p80, %p81
      %p83 = scmp.ne.s32.totalorder %s72, %s75
      %p84 = scmp.eq.s32.totalorder %s16, 1
      %p85 = por %p83, %p84
      %p86 = scmp.ne.s32.totalorder %s75, %s76
      %p87 = scmp.eq.s32.totalorder %s16, 0
      %p88 = por %p86, %p87
      %p89 = scmp.ne.s32.totalorder %s75, %s76
      %p90 = scmp.eq.s32.totalorder %s17, 1
      %p91 = por %p89, %p90
      %p93 = scmp.ne.s32.totalorder %s76, %s92
      %p94 = scmp.eq.s32.totalorder %s17, 0
      %p95 = por %p93, %p94
      %p96 = scmp.le.s32.totalorder 1, %s11
      %p97 = scmp.lt.s32.totalorder %s11, 3
      %p98 = pnand %p96, %p97
      %p99 = pneg %p98
      // Predicated region
      $region9: #{tpu_custom_call.1} parent=5 // pred_check
        _
      $region10: #{tpu_custom_call.1} parent=5 // pred_check_branch
        %101 = sbr.rel (%p98) target = $region12
      $region11: #{tpu_custom_call.1} parent=5 // pred_region
        %s102 = ssub.s32 %s11, 1
        // Predicated region
        $region13: #{tpu_custom_call.1} parent=11 // pred_check
          %p103 = pneg %p58
        $region14: #{tpu_custom_call.1} parent=11 // pred_check_branch
          %105 = sbr.rel (%p103) target = $region16
        $region15: #{tpu_custom_call.1} parent=11 // pred_region
          %s107 = ssub.s32 512, 512
          %108 = vsyncadd [#allocation3], %s107
          %s109 = sadd.s32 %s22, %s21
          %s110 = smul.addr %s109, 128
          %s111 = scalar_lea.hbm %s0, %s110
          %s112 = sshll.u32 [#allocation2], 4
          %s113 = int_to_ptr.vmem [resolvable:$true] %s112
          %118 = dma.hbm_to_vmem [thread:$0]  %s111, 512, %s113, [#allocation3], 128, 128, 8
        $region16: #{tpu_custom_call.1} parent=11 // pred_fallthru
          _
      $region12: #{tpu_custom_call.1} parent=5 // pred_fallthru
        _
      %p119 = scmp.lt.s32.totalorder %s11, 2
      // Predicated region
      $region17: #{tpu_custom_call.1} parent=5 // pred_check
        %p120 = pneg %p119
      $region18: #{tpu_custom_call.1} parent=5 // pred_check_branch
        %122 = sbr.rel (%p120) target = $region20
      $region19: #{tpu_custom_call.1} parent=5 // pred_region
        _
      $region20: #{tpu_custom_call.1} parent=5 // pred_fallthru
        _
      %p123 = scmp.le.s32.totalorder 1, %s11
      %p124 = scmp.lt.s32.totalorder %s11, 3
      %p125 = pnand %p123, %p124
      %p126 = pneg %p125
      // Predicated region
      $region21: #{tpu_custom_call.1} parent=5 // pred_check
        _
      $region22: #{tpu_custom_call.1} parent=5 // pred_check_branch
        %128 = sbr.rel (%p125) target = $region24
      $region23: #{tpu_custom_call.1} parent=5 // pred_region
        %s129 = ssub.s32 %s11, 1
        // Predicated region
        $region25: #{tpu_custom_call.1} parent=23 // pred_check
          %p130 = pneg %p58
        $region26: #{tpu_custom_call.1} parent=23 // pred_check_branch
          %132 = sbr.rel (%p130) target = $region28
        $region27: #{tpu_custom_call.1} parent=23 // pred_region
          %133 = dma.done [#allocation3], 512
        $region28: #{tpu_custom_call.1} parent=23 // pred_fallthru
          _
        %p134 = pneg %p58
        %p135 = pneg %p55
        %p136 = pneg %p88
        %p137 = pneg %p85
        %s138 = sand.u32 %s75, 1
        %s139 = scalar_lea.sflag [#allocation4], %s138
        %s140 = sand.u32 %s75, 1
        %s141 = smul.addr %s140, 32
        %s142 = scalar_lea.vmem [#allocation5], %s141
        %s143 = smul.u32 4, %s23
        %v144 = vld [vmem:[#allocation2] sm:$0xff]
        %v145 = vld [vmem:[#allocation2 + $0x8] sm:$0xff]
        %v146 = vld [vmem:[#allocation2 + $0x10] sm:$0xff]
        %v147 = vld [vmem:[#allocation2 + $0x18] sm:$0xff]
        %vm148 = vcmask 64512
        %149 = vst.msk [vmem:[%s142] sm:$0xff] %vm148, %v144
        %150 = vst.msk [vmem:[%s142 + $0x8] sm:$0xff] %vm148, %v145
        %151 = vst.msk [vmem:[%s142 + $0x10] sm:$0xff] %vm148, %v146
        %152 = vst.msk [vmem:[%s142 + $0x18] sm:$0xff] %vm148, %v147
        %s153 = sand.u32 %s75, 1
        %s154 = scalar_lea.sflag [#allocation4], %s153
        %s155 = sand.u32 %s75, 1
        %s156 = smul.addr %s155, 32
        %s157 = scalar_lea.vmem [#allocation5], %s156
        // Predicated region
        $region29: #{tpu_custom_call.1} parent=23 // pred_check
          %p158 = pneg %p85
        $region30: #{tpu_custom_call.1} parent=23 // pred_check_branch
          %160 = sbr.rel (%p158) target = $region32
        $region31: #{tpu_custom_call.1} parent=23 // pred_region
          %s161 = smul.u32 4, %s23
          %s163 = ssub.s32 512, 512
          %164 = vsyncadd %s154, %s163
          %s165 = sadd.s32 %s22, %s21
          %s166 = sadd.s32 %s165, %s161
          %s167 = smul.addr %s166, 128
          %s168 = scalar_lea.hbm %s1, %s167
          %s169 = sshll.u32 %s157, 4
          %s170 = int_to_ptr.vmem [resolvable:$true] %s169
          %175 = dma.vmem_to_hbm [thread:$0]  %s170, 512, %s168, %s154, 128, 128, 8
        $region32: #{tpu_custom_call.1} parent=23 // pred_fallthru
          _
      $region24: #{tpu_custom_call.1} parent=5 // pred_fallthru
        _
      %p176 = scmp.le.s32.totalorder 2, %s11
      // Predicated region
      $region33: #{tpu_custom_call.1} parent=5 // pred_check
        %p177 = pneg %p176
      $region34: #{tpu_custom_call.1} parent=5 // pred_check_branch
        %179 = sbr.rel (%p177) target = $region36
      $region35: #{tpu_custom_call.1} parent=5 // pred_region
        %s180 = ssub.s32 %s11, 2
        // Predicated region
        $region37: #{tpu_custom_call.1} parent=35 // pred_check
          %p181 = pneg %p91
        $region38: #{tpu_custom_call.1} parent=35 // pred_check_branch
          %183 = sbr.rel (%p181) target = $region40
        $region39: #{tpu_custom_call.1} parent=35 // pred_region
          %s184 = sand.u32 %s76, 1
          %s185 = scalar_lea.sflag [#allocation4], %s184
          %s186 = sand.u32 %s76, 1
          %s187 = smul.addr %s186, 32
          %s188 = scalar_lea.vmem [#allocation5], %s187
          %189 = dma.done %s185, 512
        $region40: #{tpu_custom_call.1} parent=35 // pred_fallthru
          _
      $region36: #{tpu_custom_call.1} parent=5 // pred_fallthru
        _
    $region6: #{tpu_custom_call.1} parent=1 // loop_footer
      %s15 = sadd.s32 1, %s11
    $region7: #{tpu_custom_call.1} parent=1 // loop_footer_branch
      %10 = sbr.rel target = $region3
    $region8: #{tpu_custom_call.1} parent=1 // loop_exit
      _
    %190 = vsyncpa [#allocation3], 1
    %s191 = scalar_lea.sflag [#allocation3], 1
    %192 = vsyncpa %s191, 1
    %193 = vsyncpa [#allocation4], 1
    %s194 = scalar_lea.sflag [#allocation4], 1
    %195 = vsyncpa %s194, 1

</llo_original>
